<compile_context>
chip_gen: v5e
topology: v5e:2x2
jax: 0.10.0
libtpu: 0.0.40
codegen_flags: <defaults>
</compile_context>

<pallas_src>
from typing import NamedTuple, Tuple

import jax
import jax.numpy as jnp
from jax.experimental import pallas as pl
from jax.experimental.pallas import tpu as pltpu


# Large finite sentinels (avoid finfo extremes interacting with later arithmetic).
_NEG_SENTINEL = -1e30
_POS_SENTINEL = 1e30
_LANE = 128


class EncoderOut(NamedTuple):
    states: Tuple
    mask: jnp.ndarray
    logits: jnp.ndarray
    indices: jnp.ndarray


def _vmem_limit_bytes(frac=0.75, fallback=32 * 1024 * 1024):
    """Per-chip VMEM budget with headroom (v7x: 64 MiB/TC, v5e/v6e: 128 MiB)."""
    try:
        return int(pltpu.get_tpu_info().vmem_capacity_bytes * frac)
    except Exception:
        return fallback


def _pick_token_tile(n_token_padded, candidates=(512, 256, 128)):
    """Largest nice token tile dividing the (128-padded) token extent."""
    for c in candidates:
        if n_token_padded % c == 0:
            return c
    return n_token_padded


def _pick_head_tile(n_head, n_token, head_dim, itemsize, max_nugget, budget):
    """Largest head tile whose double-buffered K+V blocks + outputs fit budget."""
    for tile in range(n_head, 0, -1):
        if n_head % tile:
            continue
        in_bytes = 2 * 2 * tile * n_token * head_dim * itemsize      # K+V, 2 bufs
        out_bytes = 2 * 2 * tile * max_nugget * head_dim * itemsize  # K+V outs
        if in_bytes + out_bytes <= budget:
            return tile
    return 1


# ---------------------------------------------------------------------------
# Kernel 1: scorer MLP (Linear -> ReLU -> Linear(.,1)).
# Grid (B, T_pad // TILE_T); weights resident (single-buffered when supported);
# lane-dense (1, TILE_T) score rows. Masking is done in the JAX wrapper.
# ---------------------------------------------------------------------------
def _scorer_kernel(x_ref, w1_ref, b1_ref, w2_ref, b2_ref, scores_ref):
    # In-kernel bf16 cast of the activations (VPU, hides under the MXU); the
    # matmul accumulates in fp32.
    x = x_ref[0].astype(jnp.bfloat16)                                 # (TILE_T, H)
    h = jnp.dot(x, w1_ref[...], preferred_element_type=jnp.float32)   # (TILE_T, H) f32
    h = jnp.maximum(h + b1_ref[...], 0.0)                             # bias + ReLU

    # Linear(H, 1) head: contract H of (1,H) with H of (TILE_T,H) -> a
    # lane-dense (1, TILE_T) row directly (no cross-lane relayout afterwards).
    s = jax.lax.dot_general(w2_ref[...], h, (((1,), (1,)), ((), ())),
                            preferred_element_type=jnp.float32) + b2_ref[...]
    scores_ref[0] = s.astype(scores_ref.dtype)


def scorer_scores(x, w1, b1, w2_row, b2):
    bsz, n_token, hidden = x.shape
    # Pad T up to a multiple of 128 so score stores stay lane-dense and tiles
    # are (8,128)-aligned; padded columns are sliced off below.
    t_pad = ((n_token + _LANE - 1) // _LANE) * _LANE
    if t_pad != n_token:
        x = jnp.pad(x, ((0, 0), (0, t_pad - n_token), (0, 0)))
    tile_t = _pick_token_tile(t_pad)
    w1_16 = w1.astype(jnp.bfloat16)   # one-time cast; resident on the MXU in bf16
    vmem_limit = _vmem_limit_bytes()

    def build(single_buffer_weights):
        # Single-buffer the constant-index resident weights so large-H (e.g.
        # 4096) bf16 w1 fits v7x's 64 MiB/TC VMEM.
        wkw = dict(pipeline_mode=pl.Buffered(1)) if single_buffer_weights else {}
        return pl.pallas_call(
            _scorer_kernel,
            out_shape=jax.ShapeDtypeStruct((bsz, 1, t_pad), jnp.float32),
            grid_spec=pltpu.PrefetchScalarGridSpec(
                num_scalar_prefetch=0,
                grid=(bsz, t_pad // tile_t),
                in_specs=[
                    pl.BlockSpec((1, tile_t, hidden), lambda b, t: (b, t, 0)),
                    pl.BlockSpec((hidden, hidden), lambda b, t: (0, 0), **wkw),
                    pl.BlockSpec((1, hidden), lambda b, t: (0, 0), **wkw),
                    pl.BlockSpec((1, hidden), lambda b, t: (0, 0), **wkw),
                    pl.BlockSpec((1, 1), lambda b, t: (0, 0), **wkw),
                ],
                out_specs=pl.BlockSpec((1, 1, tile_t), lambda b, t: (b, 0, t)),
            ),
            compiler_params=pltpu.CompilerParams(
                dimension_semantics=("parallel", "parallel"),
                vmem_limit_bytes=vmem_limit),
        )(x, w1_16, b1.astype(jnp.float32), w2_row.astype(jnp.float32),
          b2.astype(jnp.float32))

    try:
        scores = build(True)
    except Exception:
        # TODO(synk): pl.Buffered(1) (single-buffered resident weights) not
        # supported on this jax/libtpu build; fall back to default buffering.
        scores = build(False)
    return scores[:, 0, :n_token]
    # TODO(synk): for very large H (>= ~8K), additionally tile w1 along its
    # output-feature axis with columnwise score accumulation.


# ---------------------------------------------------------------------------
# Kernel 2: per-layer nugget KV gather. K and V fused in one call; heads are
# folded into the block; the token axis is full-extent, so there is no grid
# reduction axis, no accumulator scratch and no init/finalize phase. Each head
# is one lane-dense (M, T) x (T, Dh) one-hot MXU matmul.
# ---------------------------------------------------------------------------
def _kv_gather_kernel(idx_ref, k_ref, v_ref, ok_ref, ov_ref):
    nh_tile = k_ref.shape[1]
    max_nugget = ok_ref.shape[2]
    n_token = k_ref.shape[2]

    idx = idx_ref[0]                                                   # (M, 1) int32
    tok = jax.lax.broadcasted_iota(jnp.int32, (max_nugget, n_token), 1)
    onehot_k = (tok == idx).astype(k_ref.dtype)                        # (M, T), exact 0/1
    onehot_v = onehot_k.astype(v_ref.dtype)

    # Static per-head loop: static slices are zero-cost ref views, each store
    # lands immediately (no long live ranges).
    for h in range(nh_tile):
        ok_ref[0, h] = jnp.dot(onehot_k, k_ref[0, h],
                               preferred_element_type=jnp.float32).astype(ok_ref.dtype)
        ov_ref[0, h] = jnp.dot(onehot_v, v_ref[0, h],
                               preferred_element_type=jnp.float32).astype(ov_ref.dtype)


def gather_kv_layer(k, v, nugget_indices):
    # k, v: (B, Nh, T, Dh);  nugget_indices: (B, M) int32  ->  ((B,Nh,M,Dh), (B,Nh,M,Dh))
    bsz, n_head, n_token, head_dim = k.shape
    max_nugget = nugget_indices.shape[1]
    idx3 = nugget_indices.astype(jnp.int32)[..., None]                 # (B, M, 1)

    vmem_limit = _vmem_limit_bytes()
    nh_tile = _pick_head_tile(n_head, n_token, head_dim, k.dtype.itemsize,
                              max_nugget, budget=vmem_limit // 2)

    kv_spec = pl.BlockSpec((1, nh_tile, n_token, head_dim), lambda b, h: (b, h, 0, 0))
    out_spec = pl.BlockSpec((1, nh_tile, max_nugget, head_dim), lambda b, h: (b, h, 0, 0))
    out_shape = jax.ShapeDtypeStruct((bsz, n_head, max_nugget, head_dim), k.dtype)

    return pl.pallas_call(
        _kv_gather_kernel,
        out_shape=(out_shape, jax.ShapeDtypeStruct(out_shape.shape, v.dtype)),
        grid_spec=pltpu.PrefetchScalarGridSpec(
            num_scalar_prefetch=0,
            grid=(bsz, n_head // nh_tile),
            in_specs=[
                pl.BlockSpec((1, max_nugget, 1), lambda b, h: (b, 0, 0)),
                kv_spec,
                kv_spec,
            ],
            out_specs=[out_spec, out_spec],
        ),
        compiler_params=pltpu.CompilerParams(
            dimension_semantics=("parallel", "parallel"),
            vmem_limit_bytes=vmem_limit),
    )(idx3, k, v)
    # TODO(synk): when max_nugget << n_token, a scalar-prefetched manual DMA
    # row-gather (indices in SMEM, kv as memory_space=pl.ANY, one strided
    # async copy of kv[b,:,idx,:] per nugget) would cut HBM reads to the
    # gathered fraction instead of streaming the whole cache.


# ---------------------------------------------------------------------------
# Forward wrapper (NuggetEncoder.forward, ind_scorer path, auto=False,
# segment_map=None).
# ---------------------------------------------------------------------------
def nugget_encoder_forward(hidden_states, past_key_values, attention_mask,
                           params, ratio, nugget_layer):
    # TODO(synk): the lora_model transformer forward itself has no Pallas
    # equivalent here; hidden_states / past_key_values are module inputs.
    attention_mask = attention_mask.astype(jnp.int32)
    bsz, n_token = attention_mask.shape
    hidden = hidden_states[nugget_layer].shape[-1]

    n_tok = attention_mask.sum(1).astype(jnp.int32)                    # (B,)
    n_nugget = jnp.minimum(
        (n_tok.astype(jnp.float32) * ratio + 0.99).astype(jnp.int32), n_tok)
    # Static (jit-friendly) upper bound on nuggets per row; extra slots are
    # masked out by nugget_mask (no host sync on a data-dependent max).
    max_nugget = max(1, min(int(n_token * ratio + 0.99), n_token))

    w2_row = params['w2'].reshape(1, hidden)
    scores = scorer_scores(hidden_states[nugget_layer], params['w1'],
                           params['b1'], w2_row, params['b2'])          # (B, T) f32

    # Pad masking + force-last-token on the tiny (B, T) scores in plain JAX
    # (the kernel only emits raw scores). NOTE: assumes a contiguous
    # right-padded attention mask, as the force-last-token rule already does;
    # rows with n_tok == 0 are fully masked out by nugget_mask downstream.
    tok = jnp.arange(n_token, dtype=jnp.int32)[None, :]
    scores4 = jnp.where(tok < n_tok[:, None], scores, _NEG_SENTINEL)
    scores4 = jnp.where(tok == (n_tok - 1)[:, None], _POS_SENTINEL, scores4)

    # select_nuggets: top-k by score, re-sorted to original text order (JAX glue).
    nugget_mask = jnp.arange(max_nugget)[None, :] < n_nugget[:, None]
    ind = jnp.argsort(-scores4, axis=1)[:, :max_nugget]                 # descending
    ind4sort = ind * nugget_mask + (ind + n_token + 1) * (~nugget_mask)
    resort_ind = jnp.argsort(ind4sort, axis=1)
    indices_ascending = jnp.take_along_axis(ind, resort_ind, axis=1)
    scores_gather = jnp.take_along_axis(scores, indices_ascending, axis=1)

    # Per-layer nugget KV gather: ONE pallas_call per layer (K and V fused).
    idx32 = indices_ascending.astype(jnp.int32)
    states = tuple(gather_kv_layer(k, v, idx32) for (k, v) in past_key_values)

    # TODO(synk): scatter_segments (segment_map path) and the auto=True
    # re-encoding path are not implemented.
    return EncoderOut(states, nugget_mask, scores_gather, indices_ascending)


if __name__ == "__main__":
    key = jax.random.PRNGKey(0)
    bsz, n_token, hidden = 2, 8, 32
    n_head, head_dim, n_layers = 4, 8, 2
    ratio, nugget_layer = 0.5, 1

    ks = jax.random.split(key, 8)
    # synthetic transformer outputs (deterministic)
    hidden_states = [jax.random.normal(ks[i], (bsz, n_token, hidden), jnp.float32)
                     for i in range(n_layers + 1)]
    past_key_values = []
    for l in range(n_layers):
        k = jax.random.normal(jax.random.fold_in(ks[4], l),
                              (bsz, n_head, n_token, head_dim), jnp.float32)
        v = jax.random.normal(jax.random.fold_in(ks[5], l),
                              (bsz, n_head, n_token, head_dim), jnp.float32)
        past_key_values.append((k, v))
    attention_mask = jnp.array([[1] * 8, [1] * 6 + [0] * 2], dtype=jnp.int32)

    # scorer parameters: Linear(H,H) + Linear(H,1), deterministic init
    params = {
        'w1': jax.random.normal(ks[6], (hidden, hidden), jnp.float32) / (hidden ** 0.5),
        'b1': jnp.zeros((1, hidden), jnp.float32),
        'w2': jax.random.normal(ks[7], (hidden, 1), jnp.float32) / (hidden ** 0.5),
        'b2': jnp.zeros((1, 1), jnp.float32),
    }

    out = nugget_encoder_forward(hidden_states, past_key_values, attention_mask,
                                 params, ratio, nugget_layer)
    jax.block_until_ready(out.states)
    jax.block_until_ready(out.logits)
    jax.block_until_ready(out.indices)
    print("KERNEL_OK")
</pallas_src>

<mosaic_0001>
module attributes {stable_mosaic.version = 11 : i64} {
  func.func @_scorer_kernel(%arg0: i32, %arg1: i32, %arg2: memref<1x128x32xf32, #tpu.memory_space<vmem>>, %arg3: memref<32x32xbf16, #tpu.memory_space<vmem>>, %arg4: memref<1x32xf32, #tpu.memory_space<vmem>>, %arg5: memref<1x32xf32, #tpu.memory_space<vmem>>, %arg6: memref<1x1xf32, #tpu.memory_space<vmem>>, %arg7: memref<1x1x128xf32, #tpu.memory_space<vmem>>) attributes {dimension_semantics = [#tpu.dimension_semantics<parallel>, #tpu.dimension_semantics<parallel>], iteration_bounds = array<i64: 2, 1>, scalar_prefetch = 0 : i64, scratch_operands = 0 : i64, tpu.core_type = #tpu.core_type<tc>, window_params = [{transform_indices = @transform_0, window_bounds = array<i64: 1, 128, 32>}, {pipeline_mode = #tpu.pipeline_mode<synchronous>, transform_indices = @transform_1, window_bounds = array<i64: 32, 32>}, {pipeline_mode = #tpu.pipeline_mode<synchronous>, transform_indices = @transform_2, window_bounds = array<i64: 1, 32>}, {pipeline_mode = #tpu.pipeline_mode<synchronous>, transform_indices = @transform_3, window_bounds = array<i64: 1, 32>}, {pipeline_mode = #tpu.pipeline_mode<synchronous>, transform_indices = @transform_4, window_bounds = array<i64: 1, 1>}, {transform_indices = @transform_5, window_bounds = array<i64: 1, 1, 128>}]} {
    %c0 = arith.constant 0 : index
    %c0_0 = arith.constant 0 : index
    %c0_1 = arith.constant 0 : index
    %0 = vector.load %arg2[%c0, %c0_0, %c0_1] : memref<1x128x32xf32, #tpu.memory_space<vmem>>, vector<1x128x32xf32>
    %1 = vector.shape_cast %0 : vector<1x128x32xf32> to vector<128x32xf32>
    %2 = arith.truncf %1 : vector<128x32xf32> to vector<128x32xbf16>
    %c0_2 = arith.constant 0 : index
    %c0_3 = arith.constant 0 : index
    %3 = vector.load %arg3[%c0_2, %c0_3] : memref<32x32xbf16, #tpu.memory_space<vmem>>, vector<32x32xbf16>
    %cst = arith.constant dense<0.000000e+00> : vector<128x32xf32>
    %4 = tpu.matmul %2, %3, %cst {dimension_numbers = #tpu.dot_dimension_numbers<[1], [0], [0], [1], [0, 0, 1, 1], [], []>} : vector<128x32xbf16>, vector<32x32xbf16>, vector<128x32xf32> -> vector<128x32xf32>
    %c0_4 = arith.constant 0 : index
    %c0_5 = arith.constant 0 : index
    %5 = vector.load %arg4[%c0_4, %c0_5] : memref<1x32xf32, #tpu.memory_space<vmem>>, vector<1x32xf32>
    %6 = vector.broadcast %5 : vector<1x32xf32> to vector<128x32xf32>
    %7 = arith.addf %4, %6 : vector<128x32xf32>
    %cst_6 = arith.constant 0.000000e+00 : f32
    %8 = vector.broadcast %cst_6 : f32 to vector<128x32xf32>
    %9 = arith.maximumf %7, %8 : vector<128x32xf32>
    %c0_7 = arith.constant 0 : index
    %c0_8 = arith.constant 0 : index
    %10 = vector.load %arg5[%c0_7, %c0_8] : memref<1x32xf32, #tpu.memory_space<vmem>>, vector<1x32xf32>
    %cst_9 = arith.constant dense<0.000000e+00> : vector<1x128xf32>
    %11 = tpu.matmul %10, %9, %cst_9 {dimension_numbers = #tpu.dot_dimension_numbers<[1], [1], [0], [0], [0, 0, 1, 0], [], []>} : vector<1x32xf32>, vector<128x32xf32>, vector<1x128xf32> -> vector<1x128xf32>
    %c0_10 = arith.constant 0 : index
    %c0_11 = arith.constant 0 : index
    %12 = vector.load %arg6[%c0_10, %c0_11] : memref<1x1xf32, #tpu.memory_space<vmem>>, vector<1x1xf32>
    %13 = vector.broadcast %12 : vector<1x1xf32> to vector<1x128xf32>
    %14 = arith.addf %11, %13 : vector<1x128xf32>
    %c0_12 = arith.constant 0 : index
    %c0_13 = arith.constant 0 : index
    %c0_14 = arith.constant 0 : index
    %15 = vector.load %arg7[%c0_12, %c0_13, %c0_14] : memref<1x1x128xf32, #tpu.memory_space<vmem>>, vector<1x1x128xf32>
    %16 = vector.shape_cast %15 : vector<1x1x128xf32> to vector<1x128xf32>
    %17 = vector.shape_cast %14 : vector<1x128xf32> to vector<1x1x128xf32>
    tpu.vector_store %arg7[%c0_12, %c0_13, %c0_14], %17 {strides = array<i32>} : memref<1x1x128xf32, #tpu.memory_space<vmem>>, vector<1x1x128xf32>,
    return
  }
  func.func @transform_0(%arg0: i32, %arg1: i32) -> (i32, i32, i32) {
    %c0_i32 = arith.constant 0 : i32
    %c0_i32_0 = arith.constant 0 : i32
    return %arg0, %arg1, %c0_i32 : i32, i32, i32
  }
  func.func @transform_1(%arg0: i32, %arg1: i32) -> (i32, i32) {
    %c0_i32 = arith.constant 0 : i32
    %c0_i32_0 = arith.constant 0 : i32
    %c0_i32_1 = arith.constant 0 : i32
    return %c0_i32, %c0_i32_0 : i32, i32
  }
  func.func @transform_2(%arg0: i32, %arg1: i32) -> (i32, i32) {
    %c0_i32 = arith.constant 0 : i32
    %c0_i32_0 = arith.constant 0 : i32
    %c0_i32_1 = arith.constant 0 : i32
    return %c0_i32, %c0_i32_0 : i32, i32
  }
  func.func @transform_3(%arg0: i32, %arg1: i32) -> (i32, i32) {
    %c0_i32 = arith.constant 0 : i32
    %c0_i32_0 = arith.constant 0 : i32
    %c0_i32_1 = arith.constant 0 : i32
    return %c0_i32, %c0_i32_0 : i32, i32
  }
  func.func @transform_4(%arg0: i32, %arg1: i32) -> (i32, i32) {
    %c0_i32 = arith.constant 0 : i32
    %c0_i32_0 = arith.constant 0 : i32
    %c0_i32_1 = arith.constant 0 : i32
    return %c0_i32, %c0_i32_0 : i32, i32
  }
  func.func @transform_5(%arg0: i32, %arg1: i32) -> (i32, i32, i32) {
    %c0_i32 = arith.constant 0 : i32
    %c0_i32_0 = arith.constant 0 : i32
    return %arg0, %c0_i32, %arg1 : i32, i32, i32
  }
}

module attributes {stable_mosaic.version = 11 : i64} {
  func.func @_scorer_kernel(%arg0: i32, %arg1: i32, %arg2: memref<1x128x32xf32, #tpu.memory_space<vmem>>, %arg3: memref<32x32xbf16, #tpu.memory_space<vmem>>, %arg4: memref<1x32xf32, #tpu.memory_space<vmem>>, %arg5: memref<1x32xf32, #tpu.memory_space<vmem>>, %arg6: memref<1x1xf32, #tpu.memory_space<vmem>>, %arg7: memref<1x1x128xf32, #tpu.memory_space<vmem>>) attributes {dimension_semantics = [#tpu.dimension_semantics<parallel>, #tpu.dimension_semantics<parallel>], iteration_bounds = array<i64: 2, 1>, scalar_prefetch = 0 : i64, scratch_operands = 0 : i64, tpu.core_type = #tpu.core_type<tc>, window_params = [{transform_indices = @transform_0, window_bounds = array<i64: 1, 128, 32>}, {pipeline_mode = #tpu.pipeline_mode<synchronous>, transform_indices = @transform_1, window_bounds = array<i64: 32, 32>}, {pipeline_mode = #tpu.pipeline_mode<synchronous>, transform_indices = @transform_2, window_bounds = array<i64: 1, 32>}, {pipeline_mode = #tpu.pipeline_mode<synchronous>, transform_indices = @transform_3, window_bounds = array<i64: 1, 32>}, {pipeline_mode = #tpu.pipeline_mode<synchronous>, transform_indices = @transform_4, window_bounds = array<i64: 1, 1>}, {transform_indices = @transform_5, window_bounds = array<i64: 1, 1, 128>}]} {
    %c0 = arith.constant 0 : index
    %c0_0 = arith.constant 0 : index
    %c0_1 = arith.constant 0 : index
    %0 = vector.load %arg2[%c0, %c0_0, %c0_1] : memref<1x128x32xf32, #tpu.memory_space<vmem>>, vector<1x128x32xf32>
    %1 = vector.shape_cast %0 : vector<1x128x32xf32> to vector<128x32xf32>
    %2 = arith.truncf %1 : vector<128x32xf32> to vector<128x32xbf16>
    %c0_2 = arith.constant 0 : index
    %c0_3 = arith.constant 0 : index
    %3 = vector.load %arg3[%c0_2, %c0_3] : memref<32x32xbf16, #tpu.memory_space<vmem>>, vector<32x32xbf16>
    %cst = arith.constant dense<0.000000e+00> : vector<128x32xf32>
    %4 = tpu.matmul %2, %3, %cst {dimension_numbers = #tpu.dot_dimension_numbers<[1], [0], [0], [1], [0, 0, 1, 1], [], []>} : vector<128x32xbf16>, vector<32x32xbf16>, vector<128x32xf32> -> vector<128x32xf32>
    %c0_4 = arith.constant 0 : index
    %c0_5 = arith.constant 0 : index
    %5 = vector.load %arg4[%c0_4, %c0_5] : memref<1x32xf32, #tpu.memory_space<vmem>>, vector<1x32xf32>
    %6 = vector.broadcast %5 : vector<1x32xf32> to vector<128x32xf32>
    %7 = arith.addf %4, %6 : vector<128x32xf32>
    %cst_6 = arith.constant 0.000000e+00 : f32
    %8 = vector.broadcast %cst_6 : f32 to vector<128x32xf32>
    %9 = arith.maximumf %7, %8 : vector<128x32xf32>
    %c0_7 = arith.constant 0 : index
    %c0_8 = arith.constant 0 : index
    %10 = vector.load %arg5[%c0_7, %c0_8] : memref<1x32xf32, #tpu.memory_space<vmem>>, vector<1x32xf32>
    %cst_9 = arith.constant dense<0.000000e+00> : vector<1x128xf32>
    %11 = tpu.matmul %10, %9, %cst_9 {dimension_numbers = #tpu.dot_dimension_numbers<[1], [1], [0], [0], [0, 0, 1, 0], [], []>} : vector<1x32xf32>, vector<128x32xf32>, vector<1x128xf32> -> vector<1x128xf32>
    %c0_10 = arith.constant 0 : index
    %c0_11 = arith.constant 0 : index
    %12 = vector.load %arg6[%c0_10, %c0_11] : memref<1x1xf32, #tpu.memory_space<vmem>>, vector<1x1xf32>
    %13 = vector.broadcast %12 : vector<1x1xf32> to vector<1x128xf32>
    %14 = arith.addf %11, %13 : vector<1x128xf32>
    %c0_12 = arith.constant 0 : index
    %c0_13 = arith.constant 0 : index
    %c0_14 = arith.constant 0 : index
    %15 = vector.load %arg7[%c0_12, %c0_13, %c0_14] : memref<1x1x128xf32, #tpu.memory_space<vmem>>, vector<1x1x128xf32>
    %16 = vector.shape_cast %15 : vector<1x1x128xf32> to vector<1x128xf32>
    %17 = vector.shape_cast %14 : vector<1x128xf32> to vector<1x1x128xf32>
    tpu.vector_store %arg7[%c0_12, %c0_13, %c0_14], %17 {strides = array<i32>} : memref<1x1x128xf32, #tpu.memory_space<vmem>>, vector<1x1x128xf32>,
    return
  }
  func.func @transform_0(%arg0: i32, %arg1: i32) -> (i32, i32, i32) {
    %c0_i32 = arith.constant 0 : i32
    %c0_i32_0 = arith.constant 0 : i32
    return %arg0, %arg1, %c0_i32 : i32, i32, i32
  }
  func.func @transform_1(%arg0: i32, %arg1: i32) -> (i32, i32) {
    %c0_i32 = arith.constant 0 : i32
    %c0_i32_0 = arith.constant 0 : i32
    %c0_i32_1 = arith.constant 0 : i32
    return %c0_i32, %c0_i32_0 : i32, i32
  }
  func.func @transform_2(%arg0: i32, %arg1: i32) -> (i32, i32) {
    %c0_i32 = arith.constant 0 : i32
    %c0_i32_0 = arith.constant 0 : i32
    %c0_i32_1 = arith.constant 0 : i32
    return %c0_i32, %c0_i32_0 : i32, i32
  }
  func.func @transform_3(%arg0: i32, %arg1: i32) -> (i32, i32) {
    %c0_i32 = arith.constant 0 : i32
    %c0_i32_0 = arith.constant 0 : i32
    %c0_i32_1 = arith.constant 0 : i32
    return %c0_i32, %c0_i32_0 : i32, i32
  }
  func.func @transform_4(%arg0: i32, %arg1: i32) -> (i32, i32) {
    %c0_i32 = arith.constant 0 : i32
    %c0_i32_0 = arith.constant 0 : i32
    %c0_i32_1 = arith.constant 0 : i32
    return %c0_i32, %c0_i32_0 : i32, i32
  }
  func.func @transform_5(%arg0: i32, %arg1: i32) -> (i32, i32, i32) {
    %c0_i32 = arith.constant 0 : i32
    %c0_i32_0 = arith.constant 0 : i32
    return %arg0, %c0_i32, %arg1 : i32, i32, i32
  }
}

</mosaic_0001>

<llo_original>
// kernel: tpu_custom_call.1
$region0: #{tpu_custom_call.1}
  #allocation0 [shape = 'u32[]', space=smem, size = 0x4, offset = 0x4, fixed_abs, tag = 'smem constant byte address 0x4 - core index']
  #allocation1 [shape = 'u32[72,128]{1,0:T(1,128)}', space=vmem, size = 0x9000, scoped, tag = 'internal scratch']
  #allocation2 [shape = 'f32[1,1]{1,0:T(1,128)S(1)}', space=vmem, size = 0x200, scoped, tag = 'scoped memory for tpu_custom_call.1']
  %s0 = inlined_call_operand.vmem [shape: f32[2,128,32], index: 0, kind: input, shape index: {}]
  %s1 = inlined_call_operand.vmem [shape: bf16[32,32], index: 1, kind: input, shape index: {}]
  %s2 = inlined_call_operand.vmem [shape: f32[1,32], index: 2, kind: input, shape index: {}]
  %s3 = inlined_call_operand.vmem [shape: f32[1,32], index: 3, kind: input, shape index: {}]
  %s4 = inlined_call_operand.<no memory space> [shape: f32[1,1], index: 4, kind: input, shape index: {}]
  %s5 = inlined_call_operand.hbm [shape: f32[2,1,128], index: 5, kind: output, shape index: {}]
  %s6 = sld [smem:[#allocation0]]
  $region53: #{tpu_custom_call.1} parent=0
    _
  %s8 = ssub.s32 1, %s6
  %s9 = scalar_select 0, %s8, %s6
  %v10 = vstv %s4
  %11 = vst [vmem:[#allocation2] sm:$0x1] %v10
  $region1: #{tpu_custom_call.1} parent=0
    #allocation3 [shape = 'u8[1024]{0}', space=vmem, size = 0x400, scoped, tag = 'output window, operand 0']
    #allocation4 [shape = 's32[2]{0}', space=sflag, size = 0x8, scoped, tag = 'scoped memory for tpu_custom_call.1']
    %12 = vsyncpa [#allocation4], 0
    %s13 = scalar_lea.sflag [#allocation4], 1
    %14 = vsyncpa %s13, 0
    loop: start=0, step=1, limit=4
    $region2: #{tpu_custom_call.1} parent=1 // loop_pre_header
      _
    $region3: #{tpu_custom_call.1} parent=1 // loop_header
      %s16 = sphi 0, %s20
      %p17 = scmp.ge.s32.totalorder %s16, 4
      %s23 = sphi 0, %s35
      %s24 = sphi 0, %s31
      %s25 = sphi 0, %s23
      %s26 = sphi 0, %s24
      %s27 = sphi 0, %s25
      %s28 = sphi 0, %s26
      %s40 = sphi 0, %s42
      %s43 = sphi 0, %s40
      %s44 = sphi 0, %s43
      %s60 = sphi 0, %s44
      %s64 = sphi 0, %s64
      %s66 = sphi 0, %s64
      %s67 = sphi 0, %s66
      %s81 = sphi 0, %s67
      %s85 = sphi 0, %s85
      %s87 = sphi 0, %s85
      %s88 = sphi 0, %s87
      %s102 = sphi 0, %s88
      %s106 = sphi 0, %s106
      %s108 = sphi 0, %s106
      %s109 = sphi 0, %s108
      %s123 = sphi 0, %s109
      %s127 = sphi 0, %s127
      %s129 = sphi 0, %s127
      %s130 = sphi 0, %s129
      %s144 = sphi 0, %s130
      %s152 = sphi 0, %s154
      %s155 = sphi 0, %s152
      %s156 = sphi 0, %s155
      %s172 = sphi 0, %s156
    $region4: #{tpu_custom_call.1} parent=1 // loop_header_branch
      %19 = sbr.rel (%p17) target = $region8
    $region5: #{tpu_custom_call.1} parent=1 // loop_body
      %s21 = ssub.s32 %s16, 1
      %s22 = ssub.s32 %s16, 2
      %s29 = sadd.s32 1, %s24
      %p30 = scmp.ge.s32.totalorder %s29, 1
      %s31 = scalar_select %p30, 0, %s29
      %s32 = sadd.s32 1, %s23
      %s33 = scalar_select %p30, %s32, %s23
      %p34 = scmp.ge.s32.totalorder %s33, 2
      %s35 = scalar_select %p34, 0, %s33
      %s36 = ssub.s32 %s23, %s35
      %s37 = ssub.s32 %s24, %s31
      %s38 = sor.u32 %s36, %s37
      %p39 = scmp.eq.s32.totalorder %s38, 0
      %s41 = sadd.s32 %s40, 1
      %s42 = scalar_select %p39, %s40, %s41
      %p45 = pneg %p39
      %p46 = scmp.eq.s32.totalorder %s16, 1
      %p47 = por %p45, %p46
      %p48 = scmp.ne.s32.totalorder %s40, %s43
      %p49 = scmp.eq.s32.totalorder %s16, 0
      %p50 = por %p48, %p49
      %p51 = scmp.ne.s32.totalorder %s40, %s43
      %p52 = scmp.eq.s32.totalorder %s21, 1
      %p53 = por %p51, %p52
      %p54 = scmp.ne.s32.totalorder %s43, %s44
      %p55 = scmp.eq.s32.totalorder %s21, 0
      %p56 = por %p54, %p55
      %p57 = scmp.ne.s32.totalorder %s43, %s44
      %p58 = scmp.eq.s32.totalorder %s22, 1
      %p59 = por %p57, %p58
      %p61 = scmp.ne.s32.totalorder %s44, %s60
      %p62 = scmp.eq.s32.totalorder %s22, 0
      %p63 = por %p61, %p62
      %s65 = sadd.s32 %s64, 1
      %p68 = scmp.eq.s32.totalorder %s16, 1
      %p69 = scmp.ne.s32.totalorder %s64, %s66
      %p70 = scmp.eq.s32.totalorder %s16, 0
      %p71 = por %p69, %p70
      %p72 = scmp.ne.s32.totalorder %s64, %s66
      %p73 = scmp.eq.s32.totalorder %s21, 1
      %p74 = por %p72, %p73
      %p75 = scmp.ne.s32.totalorder %s66, %s67
      %p76 = scmp.eq.s32.totalorder %s21, 0
      %p77 = por %p75, %p76
      %p78 = scmp.ne.s32.totalorder %s66, %s67
      %p79 = scmp.eq.s32.totalorder %s22, 1
      %p80 = por %p78, %p79
      %p82 = scmp.ne.s32.totalorder %s67, %s81
      %p83 = scmp.eq.s32.totalorder %s22, 0
      %p84 = por %p82, %p83
      %s86 = sadd.s32 %s85, 1
      %p89 = scmp.eq.s32.totalorder %s16, 1
      %p90 = scmp.ne.s32.totalorder %s85, %s87
      %p91 = scmp.eq.s32.totalorder %s16, 0
      %p92 = por %p90, %p91
      %p93 = scmp.ne.s32.totalorder %s85, %s87
      %p94 = scmp.eq.s32.totalorder %s21, 1
      %p95 = por %p93, %p94
      %p96 = scmp.ne.s32.totalorder %s87, %s88
      %p97 = scmp.eq.s32.totalorder %s21, 0
      %p98 = por %p96, %p97
      %p99 = scmp.ne.s32.totalorder %s87, %s88
      %p100 = scmp.eq.s32.totalorder %s22, 1
      %p101 = por %p99, %p100
      %p103 = scmp.ne.s32.totalorder %s88, %s102
      %p104 = scmp.eq.s32.totalorder %s22, 0
      %p105 = por %p103, %p104
      %s107 = sadd.s32 %s106, 1
      %p110 = scmp.eq.s32.totalorder %s16, 1
      %p111 = scmp.ne.s32.totalorder %s106, %s108
      %p112 = scmp.eq.s32.totalorder %s16, 0
      %p113 = por %p111, %p112
      %p114 = scmp.ne.s32.totalorder %s106, %s108
      %p115 = scmp.eq.s32.totalorder %s21, 1
      %p116 = por %p114, %p115
      %p117 = scmp.ne.s32.totalorder %s108, %s109
      %p118 = scmp.eq.s32.totalorder %s21, 0
      %p119 = por %p117, %p118
      %p120 = scmp.ne.s32.totalorder %s108, %s109
      %p121 = scmp.eq.s32.totalorder %s22, 1
      %p122 = por %p120, %p121
      %p124 = scmp.ne.s32.totalorder %s109, %s123
      %p125 = scmp.eq.s32.totalorder %s22, 0
      %p126 = por %p124, %p125
      %s128 = sadd.s32 %s127, 1
      %p131 = scmp.eq.s32.totalorder %s16, 1
      %p132 = scmp.ne.s32.totalorder %s127, %s129
      %p133 = scmp.eq.s32.totalorder %s16, 0
      %p134 = por %p132, %p133
      %p135 = scmp.ne.s32.totalorder %s127, %s129
      %p136 = scmp.eq.s32.totalorder %s21, 1
      %p137 = por %p135, %p136
      %p138 = scmp.ne.s32.totalorder %s129, %s130
      %p139 = scmp.eq.s32.totalorder %s21, 0
      %p140 = por %p138, %p139
      %p141 = scmp.ne.s32.totalorder %s129, %s130
      %p142 = scmp.eq.s32.totalorder %s22, 1
      %p143 = por %p141, %p142
      %p145 = scmp.ne.s32.totalorder %s130, %s144
      %p146 = scmp.eq.s32.totalorder %s22, 0
      %p147 = por %p145, %p146
      %s148 = ssub.s32 %s23, %s35
      %s149 = ssub.s32 %s24, %s31
      %s150 = sor.u32 %s148, %s149
      %p151 = scmp.eq.s32.totalorder %s150, 0
      %s153 = sadd.s32 %s152, 1
      %s154 = scalar_select %p151, %s152, %s153
      %p157 = pneg %p151
      %p158 = scmp.eq.s32.totalorder %s16, 1
      %p159 = por %p157, %p158
      %p160 = scmp.ne.s32.totalorder %s152, %s155
      %p161 = scmp.eq.s32.totalorder %s16, 0
      %p162 = por %p160, %p161
      %p163 = scmp.ne.s32.totalorder %s152, %s155
      %p164 = scmp.eq.s32.totalorder %s21, 1
      %p165 = por %p163, %p164
      %p166 = scmp.ne.s32.totalorder %s155, %s156
      %p167 = scmp.eq.s32.totalorder %s21, 0
      %p168 = por %p166, %p167
      %p169 = scmp.ne.s32.totalorder %s155, %s156
      %p170 = scmp.eq.s32.totalorder %s22, 1
      %p171 = por %p169, %p170
      %p173 = scmp.ne.s32.totalorder %s156, %s172
      %p174 = scmp.eq.s32.totalorder %s22, 0
      %p175 = por %p173, %p174
      %p176 = scmp.le.s32.totalorder 1, %s16
      %p177 = scmp.lt.s32.totalorder %s16, 3
      %p178 = pnand %p176, %p177
      %p179 = pneg %p178
      // Predicated region
      $region9: #{tpu_custom_call.1} parent=5 // pred_check
        _
      $region10: #{tpu_custom_call.1} parent=5 // pred_check_branch
        %181 = sbr.rel (%p178) target = $region12
      $region11: #{tpu_custom_call.1} parent=5 // pred_region
        %s182 = ssub.s32 %s16, 1
        // Predicated region
        $region13: #{tpu_custom_call.1} parent=11 // pred_check
          %p183 = pneg %p77
        $region14: #{tpu_custom_call.1} parent=11 // pred_check_branch
          %185 = sbr.rel (%p183) target = $region16
        $region15: #{tpu_custom_call.1} parent=11 // pred_region
          _
        $region16: #{tpu_custom_call.1} parent=11 // pred_fallthru
          _
        // Predicated region
        $region17: #{tpu_custom_call.1} parent=11 // pred_check
          %p186 = pneg %p98
        $region18: #{tpu_custom_call.1} parent=11 // pred_check_branch
          %188 = sbr.rel (%p186) target = $region20
        $region19: #{tpu_custom_call.1} parent=11 // pred_region
          _
        $region20: #{tpu_custom_call.1} parent=11 // pred_fallthru
          _
        // Predicated region
        $region21: #{tpu_custom_call.1} parent=11 // pred_check
          %p189 = pneg %p119
        $region22: #{tpu_custom_call.1} parent=11 // pred_check_branch
          %191 = sbr.rel (%p189) target = $region24
        $region23: #{tpu_custom_call.1} parent=11 // pred_region
          _
        $region24: #{tpu_custom_call.1} parent=11 // pred_fallthru
          _
        // Predicated region
        $region25: #{tpu_custom_call.1} parent=11 // pred_check
          %p192 = pneg %p140
        $region26: #{tpu_custom_call.1} parent=11 // pred_check_branch
          %194 = sbr.rel (%p192) target = $region28
        $region27: #{tpu_custom_call.1} parent=11 // pred_region
          _
        $region28: #{tpu_custom_call.1} parent=11 // pred_fallthru
          _
      $region12: #{tpu_custom_call.1} parent=5 // pred_fallthru
        _
      %p195 = scmp.lt.s32.totalorder %s16, 2
      // Predicated region
      $region29: #{tpu_custom_call.1} parent=5 // pred_check
        %p196 = pneg %p195
      $region30: #{tpu_custom_call.1} parent=5 // pred_check_branch
        %198 = sbr.rel (%p196) target = $region32
      $region31: #{tpu_custom_call.1} parent=5 // pred_region
        // Predicated region
        $region33: #{tpu_custom_call.1} parent=31 // pred_check
          %p199 = pneg %p50
        $region34: #{tpu_custom_call.1} parent=31 // pred_check_branch
          %201 = sbr.rel (%p199) target = $region36
        $region35: #{tpu_custom_call.1} parent=31 // pred_region
          %s202 = smul.u32 16, %s24
          %p203 = scmp.lt.s32.totalorder %s23, 1
          %s204 = scalar_select %p203, %s23, 1
          %p205 = scmp.lt.s32.totalorder %s202, 15
          %s206 = scalar_select %p205, %s202, 15
          %s207 = smul.addr %s204, 16
          %s208 = sadd.s32 %s206, %s207
          %s209 = smul.addr %s208, 8
          %s210 = scalar_lea.vmem %s0, %s209
          %s211 = smul.u32 16, %s24
        $region36: #{tpu_custom_call.1} parent=31 // pred_fallthru
          _
      $region32: #{tpu_custom_call.1} parent=5 // pred_fallthru
        _
      %p212 = scmp.le.s32.totalorder 1, %s16
      %p213 = scmp.lt.s32.totalorder %s16, 3
      %p214 = pnand %p212, %p213
      %p215 = pneg %p214
      // Predicated region
      $region37: #{tpu_custom_call.1} parent=5 // pred_check
        _
      $region38: #{tpu_custom_call.1} parent=5 // pred_check_branch
        %217 = sbr.rel (%p214) target = $region40
      $region39: #{tpu_custom_call.1} parent=5 // pred_region
        %s218 = ssub.s32 %s16, 1
        %s219 = smul.u32 16, %s26
        %p220 = scmp.lt.s32.totalorder %s25, 1
        %s221 = scalar_select %p220, %s25, 1
        %p222 = scmp.lt.s32.totalorder %s219, 15
        %s223 = scalar_select %p222, %s219, 15
        %s224 = smul.addr %s221, 16
        %s225 = sadd.s32 %s223, %s224
        %s226 = smul.addr %s225, 8
        %s227 = scalar_lea.vmem %s0, %s226
        %p228 = pneg %p56
        %p229 = pneg %p53
        %p230 = pneg %p77
        %p231 = pneg %p74
        %p232 = pneg %p98
        %p233 = pneg %p95
        %p234 = pneg %p119
        %p235 = pneg %p116
        %p236 = pneg %p140
        %p237 = pneg %p137
        %p238 = pneg %p168
        %p239 = pneg %p165
        %s240 = sand.u32 %s155, 1
        %s241 = scalar_lea.sflag [#allocation4], %s240
        %s242 = sand.u32 %s155, 1
        %s243 = scalar_lea.vmem [#allocation3], %s242
        %s244 = smul.u32 16, %s26
        %p245 = scmp.lt.s32.totalorder %s25, 1
        %s246 = scalar_select %p245, %s25, 1
        %p247 = scmp.lt.s32.totalorder %s244, 15
        %s248 = scalar_select %p247, %s244, 15
        %s249 = smul.addr %s246, 16
        %s250 = sadd.s32 %s248, %s249
        %s251 = smul.addr %s250, 8
        %s252 = scalar_lea.vmem %s0, %s251
        %s253 = smul.u32 16, %s26
        %v255 = vld [vmem:[%s252] sm:$0xff]
        %v256 = vld [vmem:[%s252 + $0x8] sm:$0xff]
        %v257 = vld [vmem:[%s252 + $0x10] sm:$0xff]
        %v258 = vld [vmem:[%s252 + $0x18] sm:$0xff]
        %v259 = vld [vmem:[%s252 + $0x20] sm:$0xff]
        %v260 = vld [vmem:[%s252 + $0x28] sm:$0xff]
        %v261 = vld [vmem:[%s252 + $0x30] sm:$0xff]
        %v262 = vld [vmem:[%s252 + $0x38] sm:$0xff]
        %v263 = vld [vmem:[%s252 + $0x40] sm:$0xff]
        %v264 = vld [vmem:[%s252 + $0x48] sm:$0xff]
        %v265 = vld [vmem:[%s252 + $0x50] sm:$0xff]
        %v266 = vld [vmem:[%s252 + $0x58] sm:$0xff]
        %v267 = vld [vmem:[%s252 + $0x60] sm:$0xff]
        %v268 = vld [vmem:[%s252 + $0x68] sm:$0xff]
        %v269 = vld [vmem:[%s252 + $0x70] sm:$0xff]
        %v270 = vld [vmem:[%s252 + $0x78] sm:$0xff]
        %v271 = vpack.c.bf16 %v256, %v255
        %v272 = vpack.c.bf16 %v258, %v257
        %v273 = vpack.c.bf16 %v260, %v259
        %v274 = vpack.c.bf16 %v262, %v261
        %v275 = vpack.c.bf16 %v264, %v263
        %v276 = vpack.c.bf16 %v266, %v265
        %v277 = vpack.c.bf16 %v268, %v267
        %v278 = vpack.c.bf16 %v270, %v269
        %v279 = vld [vmem:[%s1] sm:$0xf]
        %v280 = vld [vmem:[%s1 + $0x4] sm:$0xf]
        %v281 = vld [vmem:[%s1 + $0x8] sm:$0xf]
        %v282 = vld [vmem:[%s1 + $0xc] sm:$0xf]
        %v283 = vld [vmem:[%s2] sm:$0x1]
        %v285 = vperm.slane %v283, 0
        %v291 = vunpack.c.l.b16 %v279
        %v292 = vunpack.c.l.b16 %v280
        %v293 = vunpack.c.l.b16 %v281
        %v294 = vunpack.c.l.b16 %v282
        %v295 = vpack.c.b16 %v292, %v291
        %v296 = vpack.c.b16 %v294, %v293
        %vm299 = vcmask 261120
        %v301 = vsel %vm299, %v271, 0
        %v304 = vsel %vm299, %v272, 0
        %v307 = vsel %vm299, %v273, 0
        %v310 = vsel %vm299, %v274, 0
        %v313 = vsel %vm299, %v275, 0
        %v316 = vsel %vm299, %v276, 0
        %v319 = vsel %vm299, %v277, 0
        %v322 = vsel %vm299, %v278, 0
        %324 = vmatpush.bf16.msra.mxu0 0
        %325 = vmatpush.bf16.msra.mxu0 0
        %326 = vmatpush.bf16.msra.mxu0 0
        %327 = vmatpush.bf16.msra.mxu0 0
        %328 = vmatpush.bf16.msra.mxu0 0
        %329 = vmatpush.bf16.msra.mxu0 0
        %330 = vmatpush.bf16.msra.mxu0 %v296
        %331 = vmatpush.bf16.msra.mxu0 %v295
        %332 = vmatmul.bf16.gmra.mxu0 %v301
        %v333 = vpop.f32.mrf.mxu0
        %v334 = vadd.f32 %v285, %v333
        %v335 = vpop.f32.mrf.mxu0
        %v336 = vadd.f32 %v285, %v335
        %337 = vmatmul.bf16.gmra.mxu0 %v304
        %v338 = vpop.f32.mrf.mxu0
        %v339 = vadd.f32 %v285, %v338
        %v340 = vpop.f32.mrf.mxu0
        %v341 = vadd.f32 %v285, %v340
        %342 = vmatmul.bf16.gmra.mxu0 %v307
        %v343 = vpop.f32.mrf.mxu0
        %v344 = vadd.f32 %v285, %v343
        %v345 = vpop.f32.mrf.mxu0
        %v346 = vadd.f32 %v285, %v345
        %347 = vmatmul.bf16.gmra.mxu0 %v310
        %v348 = vpop.f32.mrf.mxu0
        %v349 = vadd.f32 %v285, %v348
        %v350 = vpop.f32.mrf.mxu0
        %v351 = vadd.f32 %v285, %v350
        %352 = vmatmul.bf16.gmra.mxu0 %v313
        %v353 = vpop.f32.mrf.mxu0
        %v354 = vadd.f32 %v285, %v353
        %v355 = vpop.f32.mrf.mxu0
        %v356 = vadd.f32 %v285, %v355
        %357 = vmatmul.bf16.gmra.mxu0 %v316
        %v358 = vpop.f32.mrf.mxu0
        %v359 = vadd.f32 %v285, %v358
        %v360 = vpop.f32.mrf.mxu0
        %v361 = vadd.f32 %v285, %v360
        %362 = vmatmul.bf16.gmra.mxu0 %v319
        %v363 = vpop.f32.mrf.mxu0
        %v364 = vadd.f32 %v285, %v363
        %v365 = vpop.f32.mrf.mxu0
        %v366 = vadd.f32 %v285, %v365
        %367 = vmatmul.bf16.gmra.mxu0 %v322
        %v368 = vpop.f32.mrf.mxu0
        %v369 = vadd.f32 %v285, %v368
        %v370 = vpop.f32.mrf.mxu0
        %v371 = vadd.f32 %v285, %v370
        %372 = vdwg.mxu0
        %v373 = vmax.f32 %v334, 0.0
        %v374 = vmax.f32 %v336, 0.0
        %v375 = vmax.f32 %v339, 0.0
        %v376 = vmax.f32 %v341, 0.0
        %v377 = vmax.f32 %v344, 0.0
        %v378 = vmax.f32 %v346, 0.0
        %v379 = vmax.f32 %v349, 0.0
        %v380 = vmax.f32 %v351, 0.0
        %v381 = vmax.f32 %v354, 0.0
        %v382 = vmax.f32 %v356, 0.0
        %v383 = vmax.f32 %v359, 0.0
        %v384 = vmax.f32 %v361, 0.0
        %v385 = vmax.f32 %v364, 0.0
        %v386 = vmax.f32 %v366, 0.0
        %v387 = vmax.f32 %v369, 0.0
        %v388 = vmax.f32 %v371, 0.0
        %v389 = vld [vmem:[%s3] sm:$0x1]
        %v390 = vld [vmem:[#allocation2] sm:$0x1]
        %392 = vset.pattern.permute.xlu0 0
        %393 = vperm.xlu0 %392, %v390
        %v394 = vpop.permute.xlu0 %393
        %v396 = vperm.slane %v394, 0
        %v398 = vsel %vm299, %v389, 0
        %v401 = vsel %vm299, %v373, 0
        %v404 = vsel %vm299, %v374, 0
        %v407 = vsel %vm299, %v375, 0
        %v410 = vsel %vm299, %v376, 0
        %v413 = vsel %vm299, %v377, 0
        %v416 = vsel %vm299, %v378, 0
        %v419 = vsel %vm299, %v379, 0
        %v422 = vsel %vm299, %v380, 0
        %v425 = vsel %vm299, %v381, 0
        %v428 = vsel %vm299, %v382, 0
        %v431 = vsel %vm299, %v383, 0
        %v434 = vsel %vm299, %v384, 0
        %v437 = vsel %vm299, %v385, 0
        %v440 = vsel %vm299, %v386, 0
        %v443 = vsel %vm299, %v387, 0
        %v446 = vsel %vm299, %v388, 0
        %448 = vmatpush.xpose.msra.mxu0 %v446
        %449 = vmatpush.xpose.msra.mxu0 %v443
        %450 = vmatpush.xpose.msra.mxu0 %v440
        %451 = vmatpush.xpose.msra.mxu0 %v437
        %452 = vmatpush.xpose.msra.mxu0 %v434
        %453 = vmatpush.xpose.msra.mxu0 %v431
        %454 = vmatpush.xpose.msra.mxu0 %v428
        %455 = vmatpush.xpose.msra.mxu0 %v425
        %456 = vmatpush.xpose.msra.mxu0 %v422
        %457 = vmatpush.xpose.msra.mxu0 %v419
        %458 = vmatpush.xpose.msra.mxu0 %v416
        %459 = vmatpush.xpose.msra.mxu0 %v413
        %460 = vmatpush.xpose.msra.mxu0 %v410
        %461 = vmatpush.xpose.msra.mxu0 %v407
        %462 = vmatpush.xpose.msra.mxu0 %v404
        %463 = vmatpush.xpose.msra.mxu0 %v401
        %464 = vmatmul.f32.gmra.mxu0 %v398
        %v465 = vpop.f32.mrf.mxu0
        %v466 = vadd.f32 %v396, %v465
        %467 = vdwg.mxu0
        %468 = vst [vmem:[%s243] sm:$0x1] %v466
        %s469 = sand.u32 %s155, 1
        %s470 = scalar_lea.sflag [#allocation4], %s469
        %s471 = sand.u32 %s155, 1
        %s472 = scalar_lea.vmem [#allocation3], %s471
        // Predicated region
        $region41: #{tpu_custom_call.1} parent=39 // pred_check
          %p473 = pneg %p165
        $region42: #{tpu_custom_call.1} parent=39 // pred_check_branch
          %475 = sbr.rel (%p473) target = $region44
        $region43: #{tpu_custom_call.1} parent=39 // pred_region
          %477 = vsyncadd %s470, 0
          %s478 = sadd.s32 %s26, %s25
          %s479 = scalar_lea.hbm %s5, %s478
          %s481 = sshll.u32 %s472, 4
          %s482 = int_to_ptr.vmem [resolvable:$true] %s481
          %s483 = sshll.u32 %s479, 4
          %s484 = int_to_ptr.hbm [resolvable:$true] %s483
          %486 = dma.vmem_to_hbm [thread:$0]  %s482, 16, %s484, %s470
        $region44: #{tpu_custom_call.1} parent=39 // pred_fallthru
          _
      $region40: #{tpu_custom_call.1} parent=5 // pred_fallthru
        _
      %p487 = scmp.le.s32.totalorder 2, %s16
      // Predicated region
      $region45: #{tpu_custom_call.1} parent=5 // pred_check
        %p488 = pneg %p487
      $region46: #{tpu_custom_call.1} parent=5 // pred_check_branch
        %490 = sbr.rel (%p488) target = $region48
      $region47: #{tpu_custom_call.1} parent=5 // pred_region
        %s491 = ssub.s32 %s16, 2
        // Predicated region
        $region49: #{tpu_custom_call.1} parent=47 // pred_check
          %p492 = pneg %p171
        $region50: #{tpu_custom_call.1} parent=47 // pred_check_branch
          %494 = sbr.rel (%p492) target = $region52
        $region51: #{tpu_custom_call.1} parent=47 // pred_region
          %s495 = sand.u32 %s156, 1
          %s496 = scalar_lea.sflag [#allocation4], %s495
          %s497 = sand.u32 %s156, 1
          %s498 = scalar_lea.vmem [#allocation3], %s497
          %500 = dma.done %s496, 16
        $region52: #{tpu_custom_call.1} parent=47 // pred_fallthru
          _
      $region48: #{tpu_custom_call.1} parent=5 // pred_fallthru
        _
    $region6: #{tpu_custom_call.1} parent=1 // loop_footer
      %s20 = sadd.s32 1, %s16
    $region7: #{tpu_custom_call.1} parent=1 // loop_footer_branch
      %15 = sbr.rel target = $region3
    $region8: #{tpu_custom_call.1} parent=1 // loop_exit
      _
    %501 = vsyncpa [#allocation4], 1
    %s502 = scalar_lea.sflag [#allocation4], 1
    %503 = vsyncpa %s502, 1

// kernel: tpu_custom_call.1
$region0: #{tpu_custom_call.1}
  #allocation0 [shape = 'u32[]', space=smem, size = 0x4, offset = 0x4, fixed_abs, tag = 'smem constant byte address 0x4 - core index']
  #allocation1 [shape = 'u32[72,128]{1,0:T(1,128)}', space=vmem, size = 0x9000, scoped, tag = 'internal scratch']
  #allocation2 [shape = 'f32[1,1]{1,0:T(1,128)S(1)}', space=vmem, size = 0x200, scoped, tag = 'scoped memory for tpu_custom_call.1']
  %s0 = inlined_call_operand.vmem [shape: f32[2,128,32], index: 0, kind: input, shape index: {}]
  %s1 = inlined_call_operand.vmem [shape: bf16[32,32], index: 1, kind: input, shape index: {}]
  %s2 = inlined_call_operand.vmem [shape: f32[1,32], index: 2, kind: input, shape index: {}]
  %s3 = inlined_call_operand.vmem [shape: f32[1,32], index: 3, kind: input, shape index: {}]
  %s4 = inlined_call_operand.<no memory space> [shape: f32[1,1], index: 4, kind: input, shape index: {}]
  %s5 = inlined_call_operand.hbm [shape: f32[2,1,128], index: 5, kind: output, shape index: {}]
  %s6 = sld [smem:[#allocation0]]
  $region53: #{tpu_custom_call.1} parent=0
    _
  %s8 = ssub.s32 1, %s6
  %s9 = scalar_select 0, %s8, %s6
  %v10 = vstv %s4
  %11 = vst [vmem:[#allocation2] sm:$0x1] %v10
  $region1: #{tpu_custom_call.1} parent=0
    #allocation3 [shape = 'u8[1024]{0}', space=vmem, size = 0x400, scoped, tag = 'output window, operand 0']
    #allocation4 [shape = 's32[2]{0}', space=sflag, size = 0x8, scoped, tag = 'scoped memory for tpu_custom_call.1']
    %12 = vsyncpa [#allocation4], 0
    %s13 = scalar_lea.sflag [#allocation4], 1
    %14 = vsyncpa %s13, 0
    loop: start=0, step=1, limit=4
    $region2: #{tpu_custom_call.1} parent=1 // loop_pre_header
      _
    $region3: #{tpu_custom_call.1} parent=1 // loop_header
      %s16 = sphi 0, %s20
      %p17 = scmp.ge.s32.totalorder %s16, 4
      %s23 = sphi 0, %s35
      %s24 = sphi 0, %s31
      %s25 = sphi 0, %s23
      %s26 = sphi 0, %s24
      %s27 = sphi 0, %s25
      %s28 = sphi 0, %s26
      %s40 = sphi 0, %s42
      %s43 = sphi 0, %s40
      %s44 = sphi 0, %s43
      %s60 = sphi 0, %s44
      %s64 = sphi 0, %s64
      %s66 = sphi 0, %s64
      %s67 = sphi 0, %s66
      %s81 = sphi 0, %s67
      %s85 = sphi 0, %s85
      %s87 = sphi 0, %s85
      %s88 = sphi 0, %s87
      %s102 = sphi 0, %s88
      %s106 = sphi 0, %s106
      %s108 = sphi 0, %s106
      %s109 = sphi 0, %s108
      %s123 = sphi 0, %s109
      %s127 = sphi 0, %s127
      %s129 = sphi 0, %s127
      %s130 = sphi 0, %s129
      %s144 = sphi 0, %s130
      %s152 = sphi 0, %s154
      %s155 = sphi 0, %s152
      %s156 = sphi 0, %s155
      %s172 = sphi 0, %s156
    $region4: #{tpu_custom_call.1} parent=1 // loop_header_branch
      %19 = sbr.rel (%p17) target = $region8
    $region5: #{tpu_custom_call.1} parent=1 // loop_body
      %s21 = ssub.s32 %s16, 1
      %s22 = ssub.s32 %s16, 2
      %s29 = sadd.s32 1, %s24
      %p30 = scmp.ge.s32.totalorder %s29, 1
      %s31 = scalar_select %p30, 0, %s29
      %s32 = sadd.s32 1, %s23
      %s33 = scalar_select %p30, %s32, %s23
      %p34 = scmp.ge.s32.totalorder %s33, 2
      %s35 = scalar_select %p34, 0, %s33
      %s36 = ssub.s32 %s23, %s35
      %s37 = ssub.s32 %s24, %s31
      %s38 = sor.u32 %s36, %s37
      %p39 = scmp.eq.s32.totalorder %s38, 0
      %s41 = sadd.s32 %s40, 1
      %s42 = scalar_select %p39, %s40, %s41
      %p45 = pneg %p39
      %p46 = scmp.eq.s32.totalorder %s16, 1
      %p47 = por %p45, %p46
      %p48 = scmp.ne.s32.totalorder %s40, %s43
      %p49 = scmp.eq.s32.totalorder %s16, 0
      %p50 = por %p48, %p49
      %p51 = scmp.ne.s32.totalorder %s40, %s43
      %p52 = scmp.eq.s32.totalorder %s21, 1
      %p53 = por %p51, %p52
      %p54 = scmp.ne.s32.totalorder %s43, %s44
      %p55 = scmp.eq.s32.totalorder %s21, 0
      %p56 = por %p54, %p55
      %p57 = scmp.ne.s32.totalorder %s43, %s44
      %p58 = scmp.eq.s32.totalorder %s22, 1
      %p59 = por %p57, %p58
      %p61 = scmp.ne.s32.totalorder %s44, %s60
      %p62 = scmp.eq.s32.totalorder %s22, 0
      %p63 = por %p61, %p62
      %s65 = sadd.s32 %s64, 1
      %p68 = scmp.eq.s32.totalorder %s16, 1
      %p69 = scmp.ne.s32.totalorder %s64, %s66
      %p70 = scmp.eq.s32.totalorder %s16, 0
      %p71 = por %p69, %p70
      %p72 = scmp.ne.s32.totalorder %s64, %s66
      %p73 = scmp.eq.s32.totalorder %s21, 1
      %p74 = por %p72, %p73
      %p75 = scmp.ne.s32.totalorder %s66, %s67
      %p76 = scmp.eq.s32.totalorder %s21, 0
      %p77 = por %p75, %p76
      %p78 = scmp.ne.s32.totalorder %s66, %s67
      %p79 = scmp.eq.s32.totalorder %s22, 1
      %p80 = por %p78, %p79
      %p82 = scmp.ne.s32.totalorder %s67, %s81
      %p83 = scmp.eq.s32.totalorder %s22, 0
      %p84 = por %p82, %p83
      %s86 = sadd.s32 %s85, 1
      %p89 = scmp.eq.s32.totalorder %s16, 1
      %p90 = scmp.ne.s32.totalorder %s85, %s87
      %p91 = scmp.eq.s32.totalorder %s16, 0
      %p92 = por %p90, %p91
      %p93 = scmp.ne.s32.totalorder %s85, %s87
      %p94 = scmp.eq.s32.totalorder %s21, 1
      %p95 = por %p93, %p94
      %p96 = scmp.ne.s32.totalorder %s87, %s88
      %p97 = scmp.eq.s32.totalorder %s21, 0
      %p98 = por %p96, %p97
      %p99 = scmp.ne.s32.totalorder %s87, %s88
      %p100 = scmp.eq.s32.totalorder %s22, 1
      %p101 = por %p99, %p100
      %p103 = scmp.ne.s32.totalorder %s88, %s102
      %p104 = scmp.eq.s32.totalorder %s22, 0
      %p105 = por %p103, %p104
      %s107 = sadd.s32 %s106, 1
      %p110 = scmp.eq.s32.totalorder %s16, 1
      %p111 = scmp.ne.s32.totalorder %s106, %s108
      %p112 = scmp.eq.s32.totalorder %s16, 0
      %p113 = por %p111, %p112
      %p114 = scmp.ne.s32.totalorder %s106, %s108
      %p115 = scmp.eq.s32.totalorder %s21, 1
      %p116 = por %p114, %p115
      %p117 = scmp.ne.s32.totalorder %s108, %s109
      %p118 = scmp.eq.s32.totalorder %s21, 0
      %p119 = por %p117, %p118
      %p120 = scmp.ne.s32.totalorder %s108, %s109
      %p121 = scmp.eq.s32.totalorder %s22, 1
      %p122 = por %p120, %p121
      %p124 = scmp.ne.s32.totalorder %s109, %s123
      %p125 = scmp.eq.s32.totalorder %s22, 0
      %p126 = por %p124, %p125
      %s128 = sadd.s32 %s127, 1
      %p131 = scmp.eq.s32.totalorder %s16, 1
      %p132 = scmp.ne.s32.totalorder %s127, %s129
      %p133 = scmp.eq.s32.totalorder %s16, 0
      %p134 = por %p132, %p133
      %p135 = scmp.ne.s32.totalorder %s127, %s129
      %p136 = scmp.eq.s32.totalorder %s21, 1
      %p137 = por %p135, %p136
      %p138 = scmp.ne.s32.totalorder %s129, %s130
      %p139 = scmp.eq.s32.totalorder %s21, 0
      %p140 = por %p138, %p139
      %p141 = scmp.ne.s32.totalorder %s129, %s130
      %p142 = scmp.eq.s32.totalorder %s22, 1
      %p143 = por %p141, %p142
      %p145 = scmp.ne.s32.totalorder %s130, %s144
      %p146 = scmp.eq.s32.totalorder %s22, 0
      %p147 = por %p145, %p146
      %s148 = ssub.s32 %s23, %s35
      %s149 = ssub.s32 %s24, %s31
      %s150 = sor.u32 %s148, %s149
      %p151 = scmp.eq.s32.totalorder %s150, 0
      %s153 = sadd.s32 %s152, 1
      %s154 = scalar_select %p151, %s152, %s153
      %p157 = pneg %p151
      %p158 = scmp.eq.s32.totalorder %s16, 1
      %p159 = por %p157, %p158
      %p160 = scmp.ne.s32.totalorder %s152, %s155
      %p161 = scmp.eq.s32.totalorder %s16, 0
      %p162 = por %p160, %p161
      %p163 = scmp.ne.s32.totalorder %s152, %s155
      %p164 = scmp.eq.s32.totalorder %s21, 1
      %p165 = por %p163, %p164
      %p166 = scmp.ne.s32.totalorder %s155, %s156
      %p167 = scmp.eq.s32.totalorder %s21, 0
      %p168 = por %p166, %p167
      %p169 = scmp.ne.s32.totalorder %s155, %s156
      %p170 = scmp.eq.s32.totalorder %s22, 1
      %p171 = por %p169, %p170
      %p173 = scmp.ne.s32.totalorder %s156, %s172
      %p174 = scmp.eq.s32.totalorder %s22, 0
      %p175 = por %p173, %p174
      %p176 = scmp.le.s32.totalorder 1, %s16
      %p177 = scmp.lt.s32.totalorder %s16, 3
      %p178 = pnand %p176, %p177
      %p179 = pneg %p178
      // Predicated region
      $region9: #{tpu_custom_call.1} parent=5 // pred_check
        _
      $region10: #{tpu_custom_call.1} parent=5 // pred_check_branch
        %181 = sbr.rel (%p178) target = $region12
      $region11: #{tpu_custom_call.1} parent=5 // pred_region
        %s182 = ssub.s32 %s16, 1
        // Predicated region
        $region13: #{tpu_custom_call.1} parent=11 // pred_check
          %p183 = pneg %p77
        $region14: #{tpu_custom_call.1} parent=11 // pred_check_branch
          %185 = sbr.rel (%p183) target = $region16
        $region15: #{tpu_custom_call.1} parent=11 // pred_region
          _
        $region16: #{tpu_custom_call.1} parent=11 // pred_fallthru
          _
        // Predicated region
        $region17: #{tpu_custom_call.1} parent=11 // pred_check
          %p186 = pneg %p98
        $region18: #{tpu_custom_call.1} parent=11 // pred_check_branch
          %188 = sbr.rel (%p186) target = $region20
        $region19: #{tpu_custom_call.1} parent=11 // pred_region
          _
        $region20: #{tpu_custom_call.1} parent=11 // pred_fallthru
          _
        // Predicated region
        $region21: #{tpu_custom_call.1} parent=11 // pred_check
          %p189 = pneg %p119
        $region22: #{tpu_custom_call.1} parent=11 // pred_check_branch
          %191 = sbr.rel (%p189) target = $region24
        $region23: #{tpu_custom_call.1} parent=11 // pred_region
          _
        $region24: #{tpu_custom_call.1} parent=11 // pred_fallthru
          _
        // Predicated region
        $region25: #{tpu_custom_call.1} parent=11 // pred_check
          %p192 = pneg %p140
        $region26: #{tpu_custom_call.1} parent=11 // pred_check_branch
          %194 = sbr.rel (%p192) target = $region28
        $region27: #{tpu_custom_call.1} parent=11 // pred_region
          _
        $region28: #{tpu_custom_call.1} parent=11 // pred_fallthru
          _
      $region12: #{tpu_custom_call.1} parent=5 // pred_fallthru
        _
      %p195 = scmp.lt.s32.totalorder %s16, 2
      // Predicated region
      $region29: #{tpu_custom_call.1} parent=5 // pred_check
        %p196 = pneg %p195
      $region30: #{tpu_custom_call.1} parent=5 // pred_check_branch
        %198 = sbr.rel (%p196) target = $region32
      $region31: #{tpu_custom_call.1} parent=5 // pred_region
        // Predicated region
        $region33: #{tpu_custom_call.1} parent=31 // pred_check
          %p199 = pneg %p50
        $region34: #{tpu_custom_call.1} parent=31 // pred_check_branch
          %201 = sbr.rel (%p199) target = $region36
        $region35: #{tpu_custom_call.1} parent=31 // pred_region
          %s202 = smul.u32 16, %s24
          %p203 = scmp.lt.s32.totalorder %s23, 1
          %s204 = scalar_select %p203, %s23, 1
          %p205 = scmp.lt.s32.totalorder %s202, 15
          %s206 = scalar_select %p205, %s202, 15
          %s207 = smul.addr %s204, 16
          %s208 = sadd.s32 %s206, %s207
          %s209 = smul.addr %s208, 8
          %s210 = scalar_lea.vmem %s0, %s209
          %s211 = smul.u32 16, %s24
        $region36: #{tpu_custom_call.1} parent=31 // pred_fallthru
          _
      $region32: #{tpu_custom_call.1} parent=5 // pred_fallthru
        _
      %p212 = scmp.le.s32.totalorder 1, %s16
      %p213 = scmp.lt.s32.totalorder %s16, 3
      %p214 = pnand %p212, %p213
      %p215 = pneg %p214
      // Predicated region
      $region37: #{tpu_custom_call.1} parent=5 // pred_check
        _
      $region38: #{tpu_custom_call.1} parent=5 // pred_check_branch
        %217 = sbr.rel (%p214) target = $region40
      $region39: #{tpu_custom_call.1} parent=5 // pred_region
        %s218 = ssub.s32 %s16, 1
        %s219 = smul.u32 16, %s26
        %p220 = scmp.lt.s32.totalorder %s25, 1
        %s221 = scalar_select %p220, %s25, 1
        %p222 = scmp.lt.s32.totalorder %s219, 15
        %s223 = scalar_select %p222, %s219, 15
        %s224 = smul.addr %s221, 16
        %s225 = sadd.s32 %s223, %s224
        %s226 = smul.addr %s225, 8
        %s227 = scalar_lea.vmem %s0, %s226
        %p228 = pneg %p56
        %p229 = pneg %p53
        %p230 = pneg %p77
        %p231 = pneg %p74
        %p232 = pneg %p98
        %p233 = pneg %p95
        %p234 = pneg %p119
        %p235 = pneg %p116
        %p236 = pneg %p140
        %p237 = pneg %p137
        %p238 = pneg %p168
        %p239 = pneg %p165
        %s240 = sand.u32 %s155, 1
        %s241 = scalar_lea.sflag [#allocation4], %s240
        %s242 = sand.u32 %s155, 1
        %s243 = scalar_lea.vmem [#allocation3], %s242
        %s244 = smul.u32 16, %s26
        %p245 = scmp.lt.s32.totalorder %s25, 1
        %s246 = scalar_select %p245, %s25, 1
        %p247 = scmp.lt.s32.totalorder %s244, 15
        %s248 = scalar_select %p247, %s244, 15
        %s249 = smul.addr %s246, 16
        %s250 = sadd.s32 %s248, %s249
        %s251 = smul.addr %s250, 8
        %s252 = scalar_lea.vmem %s0, %s251
        %s253 = smul.u32 16, %s26
        %v255 = vld [vmem:[%s252] sm:$0xff]
        %v256 = vld [vmem:[%s252 + $0x8] sm:$0xff]
        %v257 = vld [vmem:[%s252 + $0x10] sm:$0xff]
        %v258 = vld [vmem:[%s252 + $0x18] sm:$0xff]
        %v259 = vld [vmem:[%s252 + $0x20] sm:$0xff]
        %v260 = vld [vmem:[%s252 + $0x28] sm:$0xff]
        %v261 = vld [vmem:[%s252 + $0x30] sm:$0xff]
        %v262 = vld [vmem:[%s252 + $0x38] sm:$0xff]
        %v263 = vld [vmem:[%s252 + $0x40] sm:$0xff]
        %v264 = vld [vmem:[%s252 + $0x48] sm:$0xff]
        %v265 = vld [vmem:[%s252 + $0x50] sm:$0xff]
        %v266 = vld [vmem:[%s252 + $0x58] sm:$0xff]
        %v267 = vld [vmem:[%s252 + $0x60] sm:$0xff]
        %v268 = vld [vmem:[%s252 + $0x68] sm:$0xff]
        %v269 = vld [vmem:[%s252 + $0x70] sm:$0xff]
        %v270 = vld [vmem:[%s252 + $0x78] sm:$0xff]
        %v271 = vpack.c.bf16 %v256, %v255
        %v272 = vpack.c.bf16 %v258, %v257
        %v273 = vpack.c.bf16 %v260, %v259
        %v274 = vpack.c.bf16 %v262, %v261
        %v275 = vpack.c.bf16 %v264, %v263
        %v276 = vpack.c.bf16 %v266, %v265
        %v277 = vpack.c.bf16 %v268, %v267
        %v278 = vpack.c.bf16 %v270, %v269
        %v279 = vld [vmem:[%s1] sm:$0xf]
        %v280 = vld [vmem:[%s1 + $0x4] sm:$0xf]
        %v281 = vld [vmem:[%s1 + $0x8] sm:$0xf]
        %v282 = vld [vmem:[%s1 + $0xc] sm:$0xf]
        %v283 = vld [vmem:[%s2] sm:$0x1]
        %v285 = vperm.slane %v283, 0
        %v291 = vunpack.c.l.b16 %v279
        %v292 = vunpack.c.l.b16 %v280
        %v293 = vunpack.c.l.b16 %v281
        %v294 = vunpack.c.l.b16 %v282
        %v295 = vpack.c.b16 %v292, %v291
        %v296 = vpack.c.b16 %v294, %v293
        %vm299 = vcmask 261120
        %v301 = vsel %vm299, %v271, 0
        %v304 = vsel %vm299, %v272, 0
        %v307 = vsel %vm299, %v273, 0
        %v310 = vsel %vm299, %v274, 0
        %v313 = vsel %vm299, %v275, 0
        %v316 = vsel %vm299, %v276, 0
        %v319 = vsel %vm299, %v277, 0
        %v322 = vsel %vm299, %v278, 0
        %324 = vmatpush.bf16.msra.mxu0 0
        %325 = vmatpush.bf16.msra.mxu0 0
        %326 = vmatpush.bf16.msra.mxu0 0
        %327 = vmatpush.bf16.msra.mxu0 0
        %328 = vmatpush.bf16.msra.mxu0 0
        %329 = vmatpush.bf16.msra.mxu0 0
        %330 = vmatpush.bf16.msra.mxu0 %v296
        %331 = vmatpush.bf16.msra.mxu0 %v295
        %332 = vmatmul.bf16.gmra.mxu0 %v301
        %v333 = vpop.f32.mrf.mxu0
        %v334 = vadd.f32 %v285, %v333
        %v335 = vpop.f32.mrf.mxu0
        %v336 = vadd.f32 %v285, %v335
        %337 = vmatmul.bf16.gmra.mxu0 %v304
        %v338 = vpop.f32.mrf.mxu0
        %v339 = vadd.f32 %v285, %v338
        %v340 = vpop.f32.mrf.mxu0
        %v341 = vadd.f32 %v285, %v340
        %342 = vmatmul.bf16.gmra.mxu0 %v307
        %v343 = vpop.f32.mrf.mxu0
        %v344 = vadd.f32 %v285, %v343
        %v345 = vpop.f32.mrf.mxu0
        %v346 = vadd.f32 %v285, %v345
        %347 = vmatmul.bf16.gmra.mxu0 %v310
        %v348 = vpop.f32.mrf.mxu0
        %v349 = vadd.f32 %v285, %v348
        %v350 = vpop.f32.mrf.mxu0
        %v351 = vadd.f32 %v285, %v350
        %352 = vmatmul.bf16.gmra.mxu0 %v313
        %v353 = vpop.f32.mrf.mxu0
        %v354 = vadd.f32 %v285, %v353
        %v355 = vpop.f32.mrf.mxu0
        %v356 = vadd.f32 %v285, %v355
        %357 = vmatmul.bf16.gmra.mxu0 %v316
        %v358 = vpop.f32.mrf.mxu0
        %v359 = vadd.f32 %v285, %v358
        %v360 = vpop.f32.mrf.mxu0
        %v361 = vadd.f32 %v285, %v360
        %362 = vmatmul.bf16.gmra.mxu0 %v319
        %v363 = vpop.f32.mrf.mxu0
        %v364 = vadd.f32 %v285, %v363
        %v365 = vpop.f32.mrf.mxu0
        %v366 = vadd.f32 %v285, %v365
        %367 = vmatmul.bf16.gmra.mxu0 %v322
        %v368 = vpop.f32.mrf.mxu0
        %v369 = vadd.f32 %v285, %v368
        %v370 = vpop.f32.mrf.mxu0
        %v371 = vadd.f32 %v285, %v370
        %372 = vdwg.mxu0
        %v373 = vmax.f32 %v334, 0.0
        %v374 = vmax.f32 %v336, 0.0
        %v375 = vmax.f32 %v339, 0.0
        %v376 = vmax.f32 %v341, 0.0
        %v377 = vmax.f32 %v344, 0.0
        %v378 = vmax.f32 %v346, 0.0
        %v379 = vmax.f32 %v349, 0.0
        %v380 = vmax.f32 %v351, 0.0
        %v381 = vmax.f32 %v354, 0.0
        %v382 = vmax.f32 %v356, 0.0
        %v383 = vmax.f32 %v359, 0.0
        %v384 = vmax.f32 %v361, 0.0
        %v385 = vmax.f32 %v364, 0.0
        %v386 = vmax.f32 %v366, 0.0
        %v387 = vmax.f32 %v369, 0.0
        %v388 = vmax.f32 %v371, 0.0
        %v389 = vld [vmem:[%s3] sm:$0x1]
        %v390 = vld [vmem:[#allocation2] sm:$0x1]
        %392 = vset.pattern.permute.xlu0 0
        %393 = vperm.xlu0 %392, %v390
        %v394 = vpop.permute.xlu0 %393
        %v396 = vperm.slane %v394, 0
        %v398 = vsel %vm299, %v389, 0
        %v401 = vsel %vm299, %v373, 0
        %v404 = vsel %vm299, %v374, 0
        %v407 = vsel %vm299, %v375, 0
        %v410 = vsel %vm299, %v376, 0
        %v413 = vsel %vm299, %v377, 0
        %v416 = vsel %vm299, %v378, 0
        %v419 = vsel %vm299, %v379, 0
        %v422 = vsel %vm299, %v380, 0
        %v425 = vsel %vm299, %v381, 0
        %v428 = vsel %vm299, %v382, 0
        %v431 = vsel %vm299, %v383, 0
        %v434 = vsel %vm299, %v384, 0
        %v437 = vsel %vm299, %v385, 0
        %v440 = vsel %vm299, %v386, 0
        %v443 = vsel %vm299, %v387, 0
        %v446 = vsel %vm299, %v388, 0
        %448 = vmatpush.xpose.msra.mxu0 %v446
        %449 = vmatpush.xpose.msra.mxu0 %v443
        %450 = vmatpush.xpose.msra.mxu0 %v440
        %451 = vmatpush.xpose.msra.mxu0 %v437
        %452 = vmatpush.xpose.msra.mxu0 %v434
        %453 = vmatpush.xpose.msra.mxu0 %v431
        %454 = vmatpush.xpose.msra.mxu0 %v428
        %455 = vmatpush.xpose.msra.mxu0 %v425
        %456 = vmatpush.xpose.msra.mxu0 %v422
        %457 = vmatpush.xpose.msra.mxu0 %v419
        %458 = vmatpush.xpose.msra.mxu0 %v416
        %459 = vmatpush.xpose.msra.mxu0 %v413
        %460 = vmatpush.xpose.msra.mxu0 %v410
        %461 = vmatpush.xpose.msra.mxu0 %v407
        %462 = vmatpush.xpose.msra.mxu0 %v404
        %463 = vmatpush.xpose.msra.mxu0 %v401
        %464 = vmatmul.f32.gmra.mxu0 %v398
        %v465 = vpop.f32.mrf.mxu0
        %v466 = vadd.f32 %v396, %v465
        %467 = vdwg.mxu0
        %468 = vst [vmem:[%s243] sm:$0x1] %v466
        %s469 = sand.u32 %s155, 1
        %s470 = scalar_lea.sflag [#allocation4], %s469
        %s471 = sand.u32 %s155, 1
        %s472 = scalar_lea.vmem [#allocation3], %s471
        // Predicated region
        $region41: #{tpu_custom_call.1} parent=39 // pred_check
          %p473 = pneg %p165
        $region42: #{tpu_custom_call.1} parent=39 // pred_check_branch
          %475 = sbr.rel (%p473) target = $region44
        $region43: #{tpu_custom_call.1} parent=39 // pred_region
          %477 = vsyncadd %s470, 0
          %s478 = sadd.s32 %s26, %s25
          %s479 = scalar_lea.hbm %s5, %s478
          %s481 = sshll.u32 %s472, 4
          %s482 = int_to_ptr.vmem [resolvable:$true] %s481
          %s483 = sshll.u32 %s479, 4
          %s484 = int_to_ptr.hbm [resolvable:$true] %s483
          %486 = dma.vmem_to_hbm [thread:$0]  %s482, 16, %s484, %s470
        $region44: #{tpu_custom_call.1} parent=39 // pred_fallthru
          _
      $region40: #{tpu_custom_call.1} parent=5 // pred_fallthru
        _
      %p487 = scmp.le.s32.totalorder 2, %s16
      // Predicated region
      $region45: #{tpu_custom_call.1} parent=5 // pred_check
        %p488 = pneg %p487
      $region46: #{tpu_custom_call.1} parent=5 // pred_check_branch
        %490 = sbr.rel (%p488) target = $region48
      $region47: #{tpu_custom_call.1} parent=5 // pred_region
        %s491 = ssub.s32 %s16, 2
        // Predicated region
        $region49: #{tpu_custom_call.1} parent=47 // pred_check
          %p492 = pneg %p171
        $region50: #{tpu_custom_call.1} parent=47 // pred_check_branch
          %494 = sbr.rel (%p492) target = $region52
        $region51: #{tpu_custom_call.1} parent=47 // pred_region
          %s495 = sand.u32 %s156, 1
          %s496 = scalar_lea.sflag [#allocation4], %s495
          %s497 = sand.u32 %s156, 1
          %s498 = scalar_lea.vmem [#allocation3], %s497
          %500 = dma.done %s496, 16
        $region52: #{tpu_custom_call.1} parent=47 // pred_fallthru
          _
      $region48: #{tpu_custom_call.1} parent=5 // pred_fallthru
        _
    $region6: #{tpu_custom_call.1} parent=1 // loop_footer
      %s20 = sadd.s32 1, %s16
    $region7: #{tpu_custom_call.1} parent=1 // loop_footer_branch
      %15 = sbr.rel target = $region3
    $region8: #{tpu_custom_call.1} parent=1 // loop_exit
      _
    %501 = vsyncpa [#allocation4], 1
    %s502 = scalar_lea.sflag [#allocation4], 1
    %503 = vsyncpa %s502, 1

</llo_original>
